<compile_context>
chip_gen: v7x
topology: tpu7x:2x2x1
jax: 0.10.0
libtpu: 0.0.40
codegen_flags: <defaults>
</compile_context>

<pallas_src>
import math

import jax
import jax.numpy as jnp
from jax.experimental import pallas as pl
from jax.experimental.pallas import tpu as pltpu


def _residual_blend_kernel(alpha_ref, base_ref, resid_ref, out_ref):
    # alpha_ref lives in SMEM (scalar prefetch, f32). Compute in f32 so bf16
    # inputs follow PyTorch promotion; for f32 inputs this is a single FMA.
    a = alpha_ref[0]
    out_ref[...] = (
        base_ref[...].astype(jnp.float32) + a * resid_ref[...].astype(jnp.float32)
    ).astype(out_ref.dtype)


def _divisors(n):
    ds = set()
    i = 1
    while i * i <= n:
        if n % i == 0:
            ds.add(i)
            ds.add(n // i)
        i += 1
    return sorted(ds)


def _choose_layout(total, sub_min, max_itemsize, target_block_bytes):
    """Pick (rows, lane, block_rows) with total == rows*lane (NO padding) and
    block_rows | rows (every store is a full, unmasked vst). None if no clean
    layout exists."""
    if total % 128 != 0:
        return None
    lane = None
    for cand in (1024, 512, 256, 128):
        if total % cand == 0 and (total // cand) % sub_min == 0:
            lane = cand
            break
    if lane is None:
        # 128-multiple but rows never hits the sublane minimum for any lane:
        # a single full-extent block is legal regardless of (8,128) divisibility.
        rows = total // 128
        if 3 * rows * 128 * max_itemsize > (16 << 20):
            return None  # too big for a single block -> plain JAX fallback
        return rows, 128, rows
    rows = total // lane
    cap_rows = max(sub_min, target_block_bytes // (lane * max_itemsize))
    divs = [d for d in _divisors(rows) if d % sub_min == 0]
    le_cap = [d for d in divs if d <= cap_rows]
    block_rows = max(le_cap) if le_cap else min(divs)
    # Keep >= 2 grid steps when possible so v7x's 2 TensorCores both get work.
    if block_rows == rows and rows >= 2 * sub_min:
        smaller = [d for d in divs if d <= rows // 2]
        if smaller:
            block_rows = max(smaller)
    return rows, lane, block_rows


def residual_blend(base_sample, residual_input, alpha, *,
                   target_block_bytes=4 << 20, min_bytes_for_kernel=1 << 20):
    """out = base_sample + alpha * residual_input (PyTorch promotion semantics)."""
    alpha32 = jnp.asarray(alpha, jnp.float32)
    out_dtype = jnp.promote_types(
        jnp.promote_types(base_sample.dtype, residual_input.dtype), jnp.float32)

    def _plain():
        # XLA fuses this elementwise op; used for tiny / broadcast / odd shapes.
        return (base_sample.astype(out_dtype)
                + alpha32.astype(out_dtype) * residual_input.astype(out_dtype))

    if base_sample.shape != residual_input.shape:
        # PyTorch `+` would broadcast; flatten-to-(rows,lane) would misalign.
        return _plain()

    orig_shape = base_sample.shape
    total = math.prod(orig_shape)
    itemsizes = [jnp.dtype(base_sample.dtype).itemsize,
                 jnp.dtype(residual_input.dtype).itemsize,
                 jnp.dtype(out_dtype).itemsize]
    max_itemsize = max(itemsizes)
    sub_min = max(8, 32 // min(itemsizes))  # 8 for f32, 16 for bf16, 32 for int8
    if total == 0 or total * max_itemsize < min_bytes_for_kernel:
        return _plain()

    layout = _choose_layout(total, sub_min, max_itemsize, target_block_bytes)
    if layout is None:
        return _plain()
    rows, lane, block_rows = layout

    base2d = base_sample.reshape(rows, lane)        # pure layout view, no pad
    resid2d = residual_input.reshape(rows, lane)
    alpha_arr = alpha32.reshape(1)

    # Reuse the base buffer for the output when dtypes match (saves an HBM
    # output allocation / copy on a strictly memory-bound op).
    aliases = {1: 0} if base2d.dtype == out_dtype else {}

    out2d = pl.pallas_call(
        _residual_blend_kernel,
        out_shape=jax.ShapeDtypeStruct((rows, lane), out_dtype),
        grid_spec=pltpu.PrefetchScalarGridSpec(
            num_scalar_prefetch=1,                  # alpha -> SMEM
            grid=(rows // block_rows,),
            in_specs=[
                pl.BlockSpec((block_rows, lane), lambda i, a: (i, 0)),
                pl.BlockSpec((block_rows, lane), lambda i, a: (i, 0)),
            ],
            out_specs=pl.BlockSpec((block_rows, lane), lambda i, a: (i, 0)),
        ),
        compiler_params=pltpu.CompilerParams(
            dimension_semantics=("parallel",),
            vmem_limit_bytes=40 << 20,
        ),
        input_output_aliases=aliases,
    )(alpha_arr, base2d, resid2d)

    return out2d.reshape(orig_shape)


def residual_diffusion_forward(base_sample, alpha, residual_input=None, **kw):
    """Mirrors ResidualDiffusionModel.forward given the unet's output sample."""
    if residual_input is None:
        return base_sample
    return residual_blend(base_sample, residual_input, alpha, **kw)


if __name__ == "__main__":
    key = jax.random.PRNGKey(0)
    k_base, k_resid = jax.random.split(key)

    # base_output.sample from the (external) unet and the residual input,
    # both NCHW latents at a small diffusion-latent-like shape.
    B, C, H, W = 2, 4, 16, 16
    base_sample = jax.random.normal(k_base, (B, C, H, W), dtype=jnp.float32)
    residual_input = jax.random.normal(k_resid, (B, C, H, W), dtype=jnp.float32)

    # nn.Parameter(torch.tensor(0.5))
    alpha = jnp.float32(0.5)

    # min_bytes_for_kernel=0 forces the Pallas path at this small test size
    # (the production default bypasses Pallas below 1 MiB where launch and
    # layout plumbing dominate).
    out = residual_diffusion_forward(base_sample, alpha, residual_input,
                                     min_bytes_for_kernel=0)
    out = jax.block_until_ready(out)
    ref = base_sample + 0.5 * residual_input
    assert out.shape == (B, C, H, W) and out.dtype == jnp.float32
    assert jnp.allclose(out, ref, atol=1e-6, rtol=1e-6)

    # Slightly larger latent exercising a multi-block "parallel" grid, pad-free.
    b2 = jax.random.normal(jax.random.PRNGKey(1), (2, 4, 64, 64), jnp.float32)
    r2 = jax.random.normal(jax.random.PRNGKey(2), (2, 4, 64, 64), jnp.float32)
    out2 = jax.block_until_ready(
        residual_diffusion_forward(b2, alpha, r2, min_bytes_for_kernel=0))
    assert jnp.allclose(out2, b2 + 0.5 * r2, atol=1e-6, rtol=1e-6)

    # bf16 inputs: f32 alpha promotes the result to f32 (PyTorch semantics).
    b3 = b2.astype(jnp.bfloat16)
    r3 = r2.astype(jnp.bfloat16)
    out3 = jax.block_until_ready(
        residual_diffusion_forward(b3, alpha, r3, min_bytes_for_kernel=0))
    ref3 = b3.astype(jnp.float32) + 0.5 * r3.astype(jnp.float32)
    assert out3.dtype == jnp.float32
    assert jnp.allclose(out3, ref3, atol=1e-5, rtol=1e-5)

    # residual_input=None path: returns the base sample unchanged.
    passthrough = residual_diffusion_forward(base_sample, alpha, None)
    assert jnp.array_equal(passthrough, base_sample)

    print("KERNEL_OK")
</pallas_src>

<mosaic_0001>
module attributes {stable_mosaic.version = 11 : i64} {
  func.func @_residual_blend_kernel(%arg0: i32, %arg1: memref<1xf32, #tpu.memory_space<smem>>, %arg2: memref<8x256xf32, #tpu.memory_space<vmem>>, %arg3: memref<8x256xf32, #tpu.memory_space<vmem>>, %arg4: memref<8x256xf32, #tpu.memory_space<vmem>>) attributes {dimension_semantics = [#tpu.dimension_semantics<parallel>], iteration_bounds = array<i64: 1>, scalar_prefetch = 1 : i64, scratch_operands = 0 : i64, tpu.core_type = #tpu.core_type<tc>, window_params = [{transform_indices = @transform_0, window_bounds = array<i64: 8, 256>}, {transform_indices = @transform_1, window_bounds = array<i64: 8, 256>}, {transform_indices = @transform_2, window_bounds = array<i64: 8, 256>}]} {
    %c0 = arith.constant 0 : index
    %0 = memref.load %arg1[%c0] : memref<1xf32, #tpu.memory_space<smem>>
    %c0_0 = arith.constant 0 : index
    %c0_1 = arith.constant 0 : index
    %1 = vector.load %arg2[%c0_0, %c0_1] : memref<8x256xf32, #tpu.memory_space<vmem>>, vector<8x256xf32>
    %c0_2 = arith.constant 0 : index
    %c0_3 = arith.constant 0 : index
    %2 = vector.load %arg3[%c0_2, %c0_3] : memref<8x256xf32, #tpu.memory_space<vmem>>, vector<8x256xf32>
    %3 = vector.broadcast %0 : f32 to vector<8x256xf32>
    %4 = arith.mulf %3, %2 : vector<8x256xf32>
    %5 = arith.addf %1, %4 : vector<8x256xf32>
    %c0_4 = arith.constant 0 : index
    %c0_5 = arith.constant 0 : index
    %6 = vector.load %arg4[%c0_4, %c0_5] : memref<8x256xf32, #tpu.memory_space<vmem>>, vector<8x256xf32>
    tpu.vector_store %arg4[%c0_4, %c0_5], %5 {strides = array<i32>} : memref<8x256xf32, #tpu.memory_space<vmem>>, vector<8x256xf32>,
    return
  }
  func.func @transform_0(%arg0: i32, %arg1: memref<1xf32, #tpu.memory_space<smem>>) -> (i32, i32) {
    %c0_i32 = arith.constant 0 : i32
    %c0_i32_0 = arith.constant 0 : i32
    return %arg0, %c0_i32 : i32, i32
  }
  func.func @transform_1(%arg0: i32, %arg1: memref<1xf32, #tpu.memory_space<smem>>) -> (i32, i32) {
    %c0_i32 = arith.constant 0 : i32
    %c0_i32_0 = arith.constant 0 : i32
    return %arg0, %c0_i32 : i32, i32
  }
  func.func @transform_2(%arg0: i32, %arg1: memref<1xf32, #tpu.memory_space<smem>>) -> (i32, i32) {
    %c0_i32 = arith.constant 0 : i32
    %c0_i32_0 = arith.constant 0 : i32
    return %arg0, %c0_i32 : i32, i32
  }
}

</mosaic_0001>

<llo_original>
// kernel: tpu_custom_call.1
$region0: #{tpu_custom_call.1}
  #allocation0 [shape = 'u32[]', space=smem, size = 0x4, offset = 0x4, fixed_abs, tag = 'smem constant byte address 0x4 - core index']
  #allocation1 [shape = 'u32[144,128]{1,0:T(1,128)}', space=vmem, size = 0x12000, scoped, tag = 'internal scratch']
  #allocation2 [shape = 's32[1]{0}', space=sflag, size = 0x4, scoped, tag = 'scoped memory for tpu_custom_call.1']
  #allocation3 [shape = 'f32[1]{0:T(128)S(6)}', space=smem, size = 0x200, scoped, tag = 'prefetched SMEM operand 0']
  %s0 = inlined_call_operand.<no memory space> [shape: f32[1], index: 0, kind: input, shape index: {}]
  %s1 = inlined_call_operand.hbm [shape: f32[8,256], index: 1, kind: input, shape index: {}, may-alias: {1,3}]
  %s2 = inlined_call_operand.vmem [shape: f32[8,256], index: 2, kind: input, shape index: {}]
  %s3 = inlined_call_operand.hbm [shape: f32[8,256], index: 3, kind: output, shape index: {}, may-alias: {1,3}]
  %s4 = sld [smem:[#allocation0]]
  $region22: #{tpu_custom_call.1} parent=0
    _
  %s6 = ssub.s32 1, %s4
  %s7 = scalar_select 0, %s6, %s4
  %8 = sst [smem:[#allocation3]] %s0
  $region1: #{tpu_custom_call.1} parent=0
    #allocation4 [shape = 'u8[8192]{0}', space=vmem, size = 0x2000, scoped, tag = 'input window, operand 1, single buffered']
    #allocation5 [shape = 's32[1]{0}', space=sflag, size = 0x4, scoped, tag = 'scoped memory for tpu_custom_call.1']
    #allocation6 [shape = 's32[1]{0}', space=sflag, size = 0x4, scoped, tag = 'scoped memory for tpu_custom_call.1']
    #allocation7 [shape = 'u8[8192]{0}', space=vmem, size = 0x2000, scoped, tag = 'output window, operand 0, single buffered']
    %9 = vsyncpa [#allocation5], 0
    %10 = vsyncpa [#allocation6], 0
    // Predicated region
    $region2: #{tpu_custom_call.1} parent=1 // pred_check
      _
    $region3: #{tpu_custom_call.1} parent=1 // pred_check_branch
      %12 = sbr.rel (0) target = $region5
    $region4: #{tpu_custom_call.1} parent=1 // pred_region
      %s14 = ssub.s32 256, 256
      %15 = vsyncadd [#allocation5], %s14
      %s17 = sshll.u32 [#allocation4], 4
      %s18 = int_to_ptr.vmem [resolvable:$true] %s17
      %20 = dma.hbm_to_vmem [thread:$0]  %s1, 256, %s18, [#allocation5]
    $region5: #{tpu_custom_call.1} parent=1 // pred_fallthru
      _
    // Predicated region
    $region6: #{tpu_custom_call.1} parent=1 // pred_check
      _
    $region7: #{tpu_custom_call.1} parent=1 // pred_check_branch
      %22 = sbr.rel (0) target = $region9
    $region8: #{tpu_custom_call.1} parent=1 // pred_region
      _
    $region9: #{tpu_custom_call.1} parent=1 // pred_fallthru
      _
    // Predicated region
    $region10: #{tpu_custom_call.1} parent=1 // pred_check
      _
    $region11: #{tpu_custom_call.1} parent=1 // pred_check_branch
      %24 = sbr.rel (0) target = $region13
    $region12: #{tpu_custom_call.1} parent=1 // pred_region
      %25 = dma.done [#allocation5], 256
    $region13: #{tpu_custom_call.1} parent=1 // pred_fallthru
      _
    %s26 = sld [smem:[#allocation3]]
    %v27 = vld [vmem:[#allocation4] sm:$0xff]
    %v28 = vld [vmem:[#allocation4 + $0x8] sm:$0xff]
    %v29 = vld [vmem:[%s2] sm:$0xff]
    %v30 = vld [vmem:[%s2 + $0x8] sm:$0xff]
    %v31 = vstv %s26
    %v32 = vmul.f32 %v31, %v29
    %v33 = vmul.f32 %v31, %v30
    %v34 = vadd.f32 %v27, %v32
    %v35 = vadd.f32 %v28, %v33
    %36 = vst [vmem:[#allocation7] sm:$0xff] %v34
    %37 = vst [vmem:[#allocation7 + $0x8] sm:$0xff] %v35
    // Predicated region
    $region14: #{tpu_custom_call.1} parent=1 // pred_check
      _
    $region15: #{tpu_custom_call.1} parent=1 // pred_check_branch
      %39 = sbr.rel (0) target = $region17
    $region16: #{tpu_custom_call.1} parent=1 // pred_region
      %s41 = ssub.s32 256, 256
      %42 = vsyncadd [#allocation6], %s41
      %s44 = sshll.u32 [#allocation7], 4
      %s45 = int_to_ptr.vmem [resolvable:$true] %s44
      %47 = dma.vmem_to_hbm [thread:$0]  %s45, 256, %s3, [#allocation6]
    $region17: #{tpu_custom_call.1} parent=1 // pred_fallthru
      _
    // Predicated region
    $region18: #{tpu_custom_call.1} parent=1 // pred_check
      _
    $region19: #{tpu_custom_call.1} parent=1 // pred_check_branch
      %49 = sbr.rel (0) target = $region21
    $region20: #{tpu_custom_call.1} parent=1 // pred_region
      %50 = dma.done [#allocation6], 256
    $region21: #{tpu_custom_call.1} parent=1 // pred_fallthru
      _
    %51 = vsyncpa [#allocation5], 1
    %52 = vsyncpa [#allocation6], 1

</llo_original>
